<compile_context>
chip_gen: v5e
topology: v5e:2x2
jax: 0.10.0
libtpu: 0.0.40
codegen_flags: <defaults>
</compile_context>

<pallas_src>
import jax
import jax.numpy as jnp
from jax.experimental import pallas as pl
from jax.experimental.pallas import tpu as pltpu


def _dqn_head_kernel(x_ref, w1_ref, b1_ref, w2_ref, b2_ref, o_ref):
    # x_ref: (tile_b, K), w1_ref: (K, Hp), b1_ref: (1, Hp), w2_ref: (Hp, Np), b2_ref: (1, Np)
    h = jnp.dot(x_ref[...], w1_ref[...], preferred_element_type=jnp.float32)   # MXU
    h = jnp.maximum(h + b1_ref[...].astype(jnp.float32), 0.0)                  # bias + ReLU (VPU)
    y = jnp.dot(h.astype(w2_ref.dtype), w2_ref[...],
                preferred_element_type=jnp.float32)                            # MXU
    o_ref[...] = (y + b2_ref[...].astype(jnp.float32)).astype(o_ref.dtype)


def _round_up(a, m):
    return (a + m - 1) // m * m


def _pick_tile_rows(B, K, Np, itemsize, *, sublane, max_rows=1024,
                    vmem_budget=40 * 1024 * 1024, weights_bytes=0):
    """Largest row tile that (a) doesn't blow up tiny batches and (b) keeps the
    double-buffered x/out tiles plus the resident weights under a v7x-safe VMEM budget."""
    tile = min(max_rows, _round_up(B, sublane))
    tile = _round_up(tile, sublane)
    while tile > sublane and 2 * tile * (K + Np) * itemsize + weights_bytes > vmem_budget:
        tile = max(sublane, tile // 2)
    return tile


def dqn_distributional_head(x, w1, b1, w2, b2, *, output_size, n_atoms,
                            image_obs=True, max_tile_rows=1024):
    """x: (..., C, H, W) if image_obs else (..., F); w1: (F, hidden); w2: (hidden, A*atoms).
    Returns (-1, output_size, n_atoms), matching the PyTorch forward."""
    if image_obs:
        x = x.reshape(x.shape[:-3] + (-1,))            # nn.Flatten(-3, -1)
    x2d = x.reshape(-1, x.shape[-1])                   # final .view(-1, ...) flattens leading dims
    B, K = x2d.shape
    Hd = w1.shape[1]
    N = w2.shape[1]
    assert w1.shape[0] == K and b1.shape == (Hd,)
    assert w2.shape[0] == Hd and b2.shape == (N,)
    assert N == output_size * n_atoms

    dtype = x2d.dtype
    itemsize = jnp.dtype(dtype).itemsize
    # Keep all matmul operands in one dtype (no per-element promote inside the kernel).
    w1 = w1.astype(dtype)
    b1 = b1.astype(dtype)
    w2 = w2.astype(dtype)
    b2 = b2.astype(dtype)

    # --- lane-dense padding (weight-side only; zero columns/rows are inert through ReLU) ---
    Hp = _round_up(Hd, 128)
    Np = _round_up(N, 128)
    if Hp != Hd:
        w1 = jnp.pad(w1, ((0, 0), (0, Hp - Hd)))
        b1 = jnp.pad(b1, ((0, Hp - Hd),))
        w2 = jnp.pad(w2, ((0, Hp - Hd), (0, 0)))
    if Np != N:
        w2 = jnp.pad(w2, ((0, 0), (0, Np - N)))
        b2 = jnp.pad(b2, ((0, Np - N),))
    b1 = b1.reshape(1, Hp)
    b2 = b2.reshape(1, Np)

    # Sub-32-bit dtypes pack 16 rows per sublane-vreg; f32 packs 8.
    sublane = 8 if itemsize >= 4 else 16
    weights_bytes = (K * Hp + Hp * Np + Hp + Np) * itemsize
    tile_b = _pick_tile_rows(B, K, Np, itemsize, sublane=sublane,
                             max_rows=max_tile_rows, weights_bytes=weights_bytes)

    # Pad rows so the grid is exact; padded rows are computed then sliced off (no tail masking).
    Rp = _round_up(B, tile_b)
    if Rp != B:
        x2d = jnp.pad(x2d, ((0, Rp - B), (0, 0)))
    grid = (Rp // tile_b,)

    out = pl.pallas_call(
        _dqn_head_kernel,
        out_shape=jax.ShapeDtypeStruct((Rp, Np), dtype),
        grid=grid,
        in_specs=[
            pl.BlockSpec((tile_b, K), lambda i: (i, 0)),   # x tile (streamed)
            pl.BlockSpec((K, Hp), lambda i: (0, 0)),       # w1 (resident)
            pl.BlockSpec((1, Hp), lambda i: (0, 0)),       # b1 (resident)
            pl.BlockSpec((Hp, Np), lambda i: (0, 0)),      # w2 (resident)
            pl.BlockSpec((1, Np), lambda i: (0, 0)),       # b2 (resident)
        ],
        out_specs=pl.BlockSpec((tile_b, Np), lambda i: (i, 0)),
        compiler_params=pltpu.CompilerParams(
            dimension_semantics=("parallel",),             # row axis shards across TCs on v7x
            vmem_limit_bytes=48 * 1024 * 1024,             # explicit, v7x-safe (64 MiB physical)
        ),
    )(x2d, w1, b1, w2, b2)

    out = out[:B, :N]
    return out.reshape(-1, output_size, n_atoms)


if __name__ == "__main__":
    key = jax.random.PRNGKey(0)
    k1, k2, kx = jax.random.split(key, 3)

    # Small shapes consistent with the module: image obs (B, C, H, W), pixels = H*W.
    batch = 2
    input_channels = 4
    hgt = wdt = 4
    pixels = hgt * wdt
    hidden_size = 32
    output_size = 6
    n_atoms = 51

    in_features = input_channels * pixels          # 64
    out_features = output_size * n_atoms           # 306

    # Deterministic init mirroring weights_init: kaiming_uniform (nonlinearity='linear')
    # -> bound = sqrt(3 / fan_in); biases zero.
    bound1 = (3.0 / in_features) ** 0.5
    bound2 = (3.0 / hidden_size) ** 0.5
    w1 = jax.random.uniform(k1, (in_features, hidden_size), jnp.float32, -bound1, bound1)
    b1 = jnp.zeros((hidden_size,), jnp.float32)
    w2 = jax.random.uniform(k2, (hidden_size, out_features), jnp.float32, -bound2, bound2)
    b2 = jnp.zeros((out_features,), jnp.float32)

    # TODO(synk): NoisyLinear path (noisy=1) resamples factored Gaussian noise on the host
    # (reset_noise); only the default noisy=0 forward is implemented here.

    x = jax.random.normal(kx, (batch, input_channels, hgt, wdt), jnp.float32)

    y = dqn_distributional_head(x, w1, b1, w2, b2,
                                output_size=output_size, n_atoms=n_atoms)
    y = jax.block_until_ready(y)

    # Pure-JAX reference of the same forward pass.
    x2d = x.reshape(batch, -1)
    ref = jnp.maximum(x2d @ w1 + b1, 0.0) @ w2 + b2
    ref = ref.reshape(-1, output_size, n_atoms)

    assert y.shape == (batch, output_size, n_atoms), y.shape
    assert jnp.allclose(y, ref, atol=1e-5, rtol=1e-5), "mismatch vs reference"

    print("KERNEL_OK")
</pallas_src>

<mosaic_0001>
module attributes {stable_mosaic.version = 11 : i64} {
  func.func @_dqn_head_kernel(%arg0: i32, %arg1: memref<8x64xf32, #tpu.memory_space<vmem>>, %arg2: memref<64x128xf32, #tpu.memory_space<vmem>>, %arg3: memref<1x128xf32, #tpu.memory_space<vmem>>, %arg4: memref<128x384xf32, #tpu.memory_space<vmem>>, %arg5: memref<1x384xf32, #tpu.memory_space<vmem>>, %arg6: memref<8x384xf32, #tpu.memory_space<vmem>>) attributes {dimension_semantics = [#tpu.dimension_semantics<parallel>], iteration_bounds = array<i64: 1>, scalar_prefetch = 0 : i64, scratch_operands = 0 : i64, tpu.core_type = #tpu.core_type<tc>, window_params = [{transform_indices = @transform_0, window_bounds = array<i64: 8, 64>}, {pipeline_mode = #tpu.pipeline_mode<synchronous>, transform_indices = @transform_1, window_bounds = array<i64: 64, 128>}, {pipeline_mode = #tpu.pipeline_mode<synchronous>, transform_indices = @transform_2, window_bounds = array<i64: 1, 128>}, {pipeline_mode = #tpu.pipeline_mode<synchronous>, transform_indices = @transform_3, window_bounds = array<i64: 128, 384>}, {pipeline_mode = #tpu.pipeline_mode<synchronous>, transform_indices = @transform_4, window_bounds = array<i64: 1, 384>}, {transform_indices = @transform_5, window_bounds = array<i64: 8, 384>}]} {
    %c0 = arith.constant 0 : index
    %c0_0 = arith.constant 0 : index
    %0 = vector.load %arg1[%c0, %c0_0] : memref<8x64xf32, #tpu.memory_space<vmem>>, vector<8x64xf32>
    %c0_1 = arith.constant 0 : index
    %c0_2 = arith.constant 0 : index
    %1 = vector.load %arg2[%c0_1, %c0_2] : memref<64x128xf32, #tpu.memory_space<vmem>>, vector<64x128xf32>
    %cst = arith.constant dense<0.000000e+00> : vector<8x128xf32>
    %2 = tpu.matmul %0, %1, %cst {dimension_numbers = #tpu.dot_dimension_numbers<[1], [0], [0], [1], [0, 0, 1, 1], [], []>} : vector<8x64xf32>, vector<64x128xf32>, vector<8x128xf32> -> vector<8x128xf32>
    %c0_3 = arith.constant 0 : index
    %c0_4 = arith.constant 0 : index
    %3 = vector.load %arg3[%c0_3, %c0_4] : memref<1x128xf32, #tpu.memory_space<vmem>>, vector<1x128xf32>
    %4 = vector.broadcast %3 : vector<1x128xf32> to vector<8x128xf32>
    %5 = arith.addf %2, %4 : vector<8x128xf32>
    %cst_5 = arith.constant 0.000000e+00 : f32
    %6 = vector.broadcast %cst_5 : f32 to vector<8x128xf32>
    %7 = arith.maximumf %5, %6 : vector<8x128xf32>
    %c0_6 = arith.constant 0 : index
    %c0_7 = arith.constant 0 : index
    %8 = vector.load %arg4[%c0_6, %c0_7] : memref<128x384xf32, #tpu.memory_space<vmem>>, vector<128x384xf32>
    %cst_8 = arith.constant dense<0.000000e+00> : vector<8x384xf32>
    %9 = tpu.matmul %7, %8, %cst_8 {dimension_numbers = #tpu.dot_dimension_numbers<[1], [0], [0], [1], [0, 0, 1, 1], [], []>} : vector<8x128xf32>, vector<128x384xf32>, vector<8x384xf32> -> vector<8x384xf32>
    %c0_9 = arith.constant 0 : index
    %c0_10 = arith.constant 0 : index
    %10 = vector.load %arg5[%c0_9, %c0_10] : memref<1x384xf32, #tpu.memory_space<vmem>>, vector<1x384xf32>
    %11 = vector.broadcast %10 : vector<1x384xf32> to vector<8x384xf32>
    %12 = arith.addf %9, %11 : vector<8x384xf32>
    %c0_11 = arith.constant 0 : index
    %c0_12 = arith.constant 0 : index
    %13 = vector.load %arg6[%c0_11, %c0_12] : memref<8x384xf32, #tpu.memory_space<vmem>>, vector<8x384xf32>
    tpu.vector_store %arg6[%c0_11, %c0_12], %12 {strides = array<i32>} : memref<8x384xf32, #tpu.memory_space<vmem>>, vector<8x384xf32>,
    return
  }
  func.func @transform_0(%arg0: i32) -> (i32, i32) {
    %c0_i32 = arith.constant 0 : i32
    %c0_i32_0 = arith.constant 0 : i32
    return %arg0, %c0_i32 : i32, i32
  }
  func.func @transform_1(%arg0: i32) -> (i32, i32) {
    %c0_i32 = arith.constant 0 : i32
    %c0_i32_0 = arith.constant 0 : i32
    %c0_i32_1 = arith.constant 0 : i32
    return %c0_i32, %c0_i32_0 : i32, i32
  }
  func.func @transform_2(%arg0: i32) -> (i32, i32) {
    %c0_i32 = arith.constant 0 : i32
    %c0_i32_0 = arith.constant 0 : i32
    %c0_i32_1 = arith.constant 0 : i32
    return %c0_i32, %c0_i32_0 : i32, i32
  }
  func.func @transform_3(%arg0: i32) -> (i32, i32) {
    %c0_i32 = arith.constant 0 : i32
    %c0_i32_0 = arith.constant 0 : i32
    %c0_i32_1 = arith.constant 0 : i32
    return %c0_i32, %c0_i32_0 : i32, i32
  }
  func.func @transform_4(%arg0: i32) -> (i32, i32) {
    %c0_i32 = arith.constant 0 : i32
    %c0_i32_0 = arith.constant 0 : i32
    %c0_i32_1 = arith.constant 0 : i32
    return %c0_i32, %c0_i32_0 : i32, i32
  }
  func.func @transform_5(%arg0: i32) -> (i32, i32) {
    %c0_i32 = arith.constant 0 : i32
    %c0_i32_0 = arith.constant 0 : i32
    return %arg0, %c0_i32 : i32, i32
  }
}

</mosaic_0001>

<llo_original>
// kernel: tpu_custom_call.1
$region0: #{tpu_custom_call.1}
  #allocation0 [shape = 'u32[]', space=smem, size = 0x4, offset = 0x4, fixed_abs, tag = 'smem constant byte address 0x4 - core index']
  #allocation1 [shape = 'u32[72,128]{1,0:T(1,128)}', space=vmem, size = 0x9000, scoped, tag = 'internal scratch']
  %s0 = inlined_call_operand.hbm [shape: f32[8,64], index: 0, kind: input, shape index: {}]
  %s1 = inlined_call_operand.hbm [shape: f32[64,128], index: 1, kind: input, shape index: {}]
  %s2 = inlined_call_operand.hbm [shape: f32[1,128], index: 2, kind: input, shape index: {}]
  %s3 = inlined_call_operand.hbm [shape: f32[128,384], index: 3, kind: input, shape index: {}]
  %s4 = inlined_call_operand.vmem [shape: f32[1,384], index: 4, kind: input, shape index: {}]
  %s5 = inlined_call_operand.hbm [shape: f32[8,384], index: 5, kind: output, shape index: {}]
  %s6 = sld [smem:[#allocation0]]
  $region46: #{tpu_custom_call.1} parent=0
    _
  %s8 = ssub.s32 1, %s6
  %s9 = scalar_select 0, %s8, %s6
  $region1: #{tpu_custom_call.1} parent=0
    #allocation2 [shape = 'u8[4096]{0}', space=vmem, size = 0x1000, scoped, tag = 'input window, operand 0, single buffered']
    #allocation3 [shape = 's32[1]{0}', space=sflag, size = 0x4, scoped, tag = 'scoped memory for tpu_custom_call.1']
    #allocation4 [shape = 's32[1]{0}', space=sflag, size = 0x4, scoped, tag = 'scoped memory for tpu_custom_call.1']
    #allocation5 [shape = 'u8[32768]{0}', space=vmem, size = 0x8000, scoped, tag = 'input window, operand 1, single buffered']
    #allocation6 [shape = 's32[1]{0}', space=sflag, size = 0x4, scoped, tag = 'scoped memory for tpu_custom_call.1']
    #allocation7 [shape = 'u8[512]{0}', space=vmem, size = 0x400, scoped, tag = 'input window, operand 2, single buffered']
    #allocation8 [shape = 'u8[196608]{0}', space=vmem, size = 0x30000, scoped, tag = 'input window, operand 3, single buffered']
    #allocation9 [shape = 's32[1]{0}', space=sflag, size = 0x4, scoped, tag = 'scoped memory for tpu_custom_call.1']
    #allocation10 [shape = 'u8[12288]{0}', space=vmem, size = 0x3000, scoped, tag = 'output window, operand 0, single buffered']
    %10 = vsyncpa [#allocation3], 0
    %11 = vsyncpa [#allocation6], 0
    %12 = vsyncpa [#allocation9], 0
    %13 = vsyncpa [#allocation4], 0
    // Predicated region
    $region2: #{tpu_custom_call.1} parent=1 // pred_check
      _
    $region3: #{tpu_custom_call.1} parent=1 // pred_check_branch
      %15 = sbr.rel (0) target = $region5
    $region4: #{tpu_custom_call.1} parent=1 // pred_region
      %17 = vsyncadd [#allocation3], 0
      %s19 = sshll.u32 %s0, 4
      %s20 = int_to_ptr.hbm [resolvable:$true] %s19
      %s21 = sshll.u32 [#allocation2], 4
      %s22 = int_to_ptr.vmem [resolvable:$true] %s21
      %24 = dma.hbm_to_vmem [thread:$0]  %s20, 128, %s22, [#allocation3]
    $region5: #{tpu_custom_call.1} parent=1 // pred_fallthru
      _
    // Predicated region
    $region6: #{tpu_custom_call.1} parent=1 // pred_check
      _
    $region7: #{tpu_custom_call.1} parent=1 // pred_check_branch
      %26 = sbr.rel (0) target = $region9
    $region8: #{tpu_custom_call.1} parent=1 // pred_region
      %28 = vsyncadd [#allocation6], 0
      %s29 = sshll.u32 %s1, 4
      %s30 = int_to_ptr.hbm [resolvable:$true] %s29
      %s31 = sshll.u32 [#allocation5], 4
      %s32 = int_to_ptr.vmem [resolvable:$true] %s31
      %37 = dma.hbm_to_vmem [thread:$0]  %s30, 1024, %s32, [#allocation6], 128, 128, 8
    $region9: #{tpu_custom_call.1} parent=1 // pred_fallthru
      _
    // Predicated region
    $region10: #{tpu_custom_call.1} parent=1 // pred_check
      _
    $region11: #{tpu_custom_call.1} parent=1 // pred_check_branch
      %39 = sbr.rel (0) target = $region13
    $region12: #{tpu_custom_call.1} parent=1 // pred_region
      %41 = vsyncadd [#allocation6], 0
      %s43 = sshll.u32 %s2, 4
      %s44 = int_to_ptr.hbm [resolvable:$true] %s43
      %s45 = sshll.u32 [#allocation7], 4
      %s46 = int_to_ptr.vmem [resolvable:$true] %s45
      %48 = dma.hbm_to_vmem [thread:$0]  %s44, 16, %s46, [#allocation6]
    $region13: #{tpu_custom_call.1} parent=1 // pred_fallthru
      _
    // Predicated region
    $region14: #{tpu_custom_call.1} parent=1 // pred_check
      _
    $region15: #{tpu_custom_call.1} parent=1 // pred_check_branch
      %50 = sbr.rel (0) target = $region17
    $region16: #{tpu_custom_call.1} parent=1 // pred_region
      %52 = vsyncadd [#allocation9], 0
      %s53 = sshll.u32 %s3, 4
      %s54 = int_to_ptr.hbm [resolvable:$true] %s53
      %s55 = sshll.u32 [#allocation8], 4
      %s56 = int_to_ptr.vmem [resolvable:$true] %s55
      %61 = dma.hbm_to_vmem [thread:$0]  %s54, 6144, %s56, [#allocation9], 384, 384, 24
    $region17: #{tpu_custom_call.1} parent=1 // pred_fallthru
      _
    // Predicated region
    $region18: #{tpu_custom_call.1} parent=1 // pred_check
      _
    $region19: #{tpu_custom_call.1} parent=1 // pred_check_branch
      %63 = sbr.rel (0) target = $region21
    $region20: #{tpu_custom_call.1} parent=1 // pred_region
      _
    $region21: #{tpu_custom_call.1} parent=1 // pred_fallthru
      _
    // Predicated region
    $region22: #{tpu_custom_call.1} parent=1 // pred_check
      _
    $region23: #{tpu_custom_call.1} parent=1 // pred_check_branch
      %65 = sbr.rel (0) target = $region25
    $region24: #{tpu_custom_call.1} parent=1 // pred_region
      %67 = dma.done [#allocation3], 128
    $region25: #{tpu_custom_call.1} parent=1 // pred_fallthru
      _
    // Predicated region
    $region26: #{tpu_custom_call.1} parent=1 // pred_check
      _
    $region27: #{tpu_custom_call.1} parent=1 // pred_check_branch
      %69 = sbr.rel (0) target = $region29
    $region28: #{tpu_custom_call.1} parent=1 // pred_region
      %71 = dma.done [#allocation6], 1024
    $region29: #{tpu_custom_call.1} parent=1 // pred_fallthru
      _
    // Predicated region
    $region30: #{tpu_custom_call.1} parent=1 // pred_check
      _
    $region31: #{tpu_custom_call.1} parent=1 // pred_check_branch
      %73 = sbr.rel (0) target = $region33
    $region32: #{tpu_custom_call.1} parent=1 // pred_region
      %75 = dma.done [#allocation6], 16
    $region33: #{tpu_custom_call.1} parent=1 // pred_fallthru
      _
    // Predicated region
    $region34: #{tpu_custom_call.1} parent=1 // pred_check
      _
    $region35: #{tpu_custom_call.1} parent=1 // pred_check_branch
      %77 = sbr.rel (0) target = $region37
    $region36: #{tpu_custom_call.1} parent=1 // pred_region
      %79 = dma.done [#allocation9], 6144
    $region37: #{tpu_custom_call.1} parent=1 // pred_fallthru
      _
    %v80 = vld [vmem:[#allocation2] sm:$0xff]
    %v81 = vld [vmem:[#allocation5] sm:$0xff]
    %v82 = vld [vmem:[#allocation5 + $0x8] sm:$0xff]
    %v83 = vld [vmem:[#allocation5 + $0x10] sm:$0xff]
    %v84 = vld [vmem:[#allocation5 + $0x18] sm:$0xff]
    %v85 = vld [vmem:[#allocation5 + $0x20] sm:$0xff]
    %v86 = vld [vmem:[#allocation5 + $0x28] sm:$0xff]
    %v87 = vld [vmem:[#allocation5 + $0x30] sm:$0xff]
    %v88 = vld [vmem:[#allocation5 + $0x38] sm:$0xff]
    %v89 = vld [vmem:[#allocation7] sm:$0x1]
    %v91 = vperm.slane %v89, 0
    %vm93 = vcmask 523264
    %v95 = vsel %vm93, %v80, 0
    %97 = vmatpush.msra.mxu0 0.0
    %98 = vmatpush.msra.mxu0 0.0
    %99 = vmatpush.msra.mxu0 0.0
    %100 = vmatpush.msra.mxu0 0.0
    %101 = vmatpush.msra.mxu0 0.0
    %102 = vmatpush.msra.mxu0 0.0
    %103 = vmatpush.msra.mxu0 0.0
    %104 = vmatpush.msra.mxu0 0.0
    %105 = vmatpush.msra.mxu0 %v88
    %106 = vmatpush.msra.mxu0 %v87
    %107 = vmatpush.msra.mxu0 %v86
    %108 = vmatpush.msra.mxu0 %v85
    %109 = vmatpush.msra.mxu0 %v84
    %110 = vmatpush.msra.mxu0 %v83
    %111 = vmatpush.msra.mxu0 %v82
    %112 = vmatpush.msra.mxu0 %v81
    %113 = vmatmul.f32.gmra.mxu0 %v95
    %v114 = vpop.f32.mrf.mxu0
    %v115 = vadd.f32 %v91, %v114
    %116 = vdwg.mxu0
    %v117 = vmax.f32 %v115, 0.0
    %v118 = vld [vmem:[#allocation8] sm:$0xff]
    %v119 = vld [vmem:[#allocation8 + $0x8] sm:$0xff]
    %v120 = vld [vmem:[#allocation8 + $0x10] sm:$0xff]
    %v121 = vld [vmem:[#allocation8 + $0x18] sm:$0xff]
    %v122 = vld [vmem:[#allocation8 + $0x20] sm:$0xff]
    %v123 = vld [vmem:[#allocation8 + $0x28] sm:$0xff]
    %v124 = vld [vmem:[#allocation8 + $0x30] sm:$0xff]
    %v125 = vld [vmem:[#allocation8 + $0x38] sm:$0xff]
    %v126 = vld [vmem:[#allocation8 + $0x40] sm:$0xff]
    %v127 = vld [vmem:[#allocation8 + $0x48] sm:$0xff]
    %v128 = vld [vmem:[#allocation8 + $0x50] sm:$0xff]
    %v129 = vld [vmem:[#allocation8 + $0x58] sm:$0xff]
    %v130 = vld [vmem:[#allocation8 + $0x60] sm:$0xff]
    %v131 = vld [vmem:[#allocation8 + $0x68] sm:$0xff]
    %v132 = vld [vmem:[#allocation8 + $0x70] sm:$0xff]
    %v133 = vld [vmem:[#allocation8 + $0x78] sm:$0xff]
    %v134 = vld [vmem:[#allocation8 + $0x80] sm:$0xff]
    %v135 = vld [vmem:[#allocation8 + $0x88] sm:$0xff]
    %v136 = vld [vmem:[#allocation8 + $0x90] sm:$0xff]
    %v137 = vld [vmem:[#allocation8 + $0x98] sm:$0xff]
    %v138 = vld [vmem:[#allocation8 + $0xa0] sm:$0xff]
    %v139 = vld [vmem:[#allocation8 + $0xa8] sm:$0xff]
    %v140 = vld [vmem:[#allocation8 + $0xb0] sm:$0xff]
    %v141 = vld [vmem:[#allocation8 + $0xb8] sm:$0xff]
    %v142 = vld [vmem:[#allocation8 + $0xc0] sm:$0xff]
    %v143 = vld [vmem:[#allocation8 + $0xc8] sm:$0xff]
    %v144 = vld [vmem:[#allocation8 + $0xd0] sm:$0xff]
    %v145 = vld [vmem:[#allocation8 + $0xd8] sm:$0xff]
    %v146 = vld [vmem:[#allocation8 + $0xe0] sm:$0xff]
    %v147 = vld [vmem:[#allocation8 + $0xe8] sm:$0xff]
    %v148 = vld [vmem:[#allocation8 + $0xf0] sm:$0xff]
    %v149 = vld [vmem:[#allocation8 + $0xf8] sm:$0xff]
    %v150 = vld [vmem:[#allocation8 + $0x100] sm:$0xff]
    %v151 = vld [vmem:[#allocation8 + $0x108] sm:$0xff]
    %v152 = vld [vmem:[#allocation8 + $0x110] sm:$0xff]
    %v153 = vld [vmem:[#allocation8 + $0x118] sm:$0xff]
    %v154 = vld [vmem:[#allocation8 + $0x120] sm:$0xff]
    %v155 = vld [vmem:[#allocation8 + $0x128] sm:$0xff]
    %v156 = vld [vmem:[#allocation8 + $0x130] sm:$0xff]
    %v157 = vld [vmem:[#allocation8 + $0x138] sm:$0xff]
    %v158 = vld [vmem:[#allocation8 + $0x140] sm:$0xff]
    %v159 = vld [vmem:[#allocation8 + $0x148] sm:$0xff]
    %v160 = vld [vmem:[#allocation8 + $0x150] sm:$0xff]
    %v161 = vld [vmem:[#allocation8 + $0x158] sm:$0xff]
    %v162 = vld [vmem:[#allocation8 + $0x160] sm:$0xff]
    %v163 = vld [vmem:[#allocation8 + $0x168] sm:$0xff]
    %v164 = vld [vmem:[#allocation8 + $0x170] sm:$0xff]
    %v165 = vld [vmem:[#allocation8 + $0x178] sm:$0xff]
    %v166 = vld [vmem:[%s4] sm:$0x7]
    %v168 = vperm.slane %v166, 0
    %v169 = vperm.slane %v166, 1
    %v170 = vperm.slane %v166, 2
    %174 = vmatpush.msra.mxu0 %v163
    %175 = vmatpush.msra.mxu0 %v160
    %176 = vmatpush.msra.mxu0 %v157
    %177 = vmatpush.msra.mxu0 %v154
    %178 = vmatpush.msra.mxu0 %v151
    %179 = vmatpush.msra.mxu0 %v148
    %180 = vmatpush.msra.mxu0 %v145
    %181 = vmatpush.msra.mxu0 %v142
    %182 = vmatpush.msra.mxu0 %v139
    %183 = vmatpush.msra.mxu0 %v136
    %184 = vmatpush.msra.mxu0 %v133
    %185 = vmatpush.msra.mxu0 %v130
    %186 = vmatpush.msra.mxu0 %v127
    %187 = vmatpush.msra.mxu0 %v124
    %188 = vmatpush.msra.mxu0 %v121
    %189 = vmatpush.msra.mxu0 %v118
    %190 = vmatmul.f32.gmra.mxu0 %v117
    %v191 = vpop.f32.mrf.mxu0
    %v192 = vadd.f32 %v168, %v191
    %193 = vdwg.mxu0
    %194 = vmatpush.msra.mxu0 %v164
    %195 = vmatpush.msra.mxu0 %v161
    %196 = vmatpush.msra.mxu0 %v158
    %197 = vmatpush.msra.mxu0 %v155
    %198 = vmatpush.msra.mxu0 %v152
    %199 = vmatpush.msra.mxu0 %v149
    %200 = vmatpush.msra.mxu0 %v146
    %201 = vmatpush.msra.mxu0 %v143
    %202 = vmatpush.msra.mxu0 %v140
    %203 = vmatpush.msra.mxu0 %v137
    %204 = vmatpush.msra.mxu0 %v134
    %205 = vmatpush.msra.mxu0 %v131
    %206 = vmatpush.msra.mxu0 %v128
    %207 = vmatpush.msra.mxu0 %v125
    %208 = vmatpush.msra.mxu0 %v122
    %209 = vmatpush.msra.mxu0 %v119
    %210 = vmatmul.f32.gmra.mxu0 %v117
    %v211 = vpop.f32.mrf.mxu0
    %v212 = vadd.f32 %v169, %v211
    %213 = vdwg.mxu0
    %214 = vmatpush.msra.mxu0 %v165
    %215 = vmatpush.msra.mxu0 %v162
    %216 = vmatpush.msra.mxu0 %v159
    %217 = vmatpush.msra.mxu0 %v156
    %218 = vmatpush.msra.mxu0 %v153
    %219 = vmatpush.msra.mxu0 %v150
    %220 = vmatpush.msra.mxu0 %v147
    %221 = vmatpush.msra.mxu0 %v144
    %222 = vmatpush.msra.mxu0 %v141
    %223 = vmatpush.msra.mxu0 %v138
    %224 = vmatpush.msra.mxu0 %v135
    %225 = vmatpush.msra.mxu0 %v132
    %226 = vmatpush.msra.mxu0 %v129
    %227 = vmatpush.msra.mxu0 %v126
    %228 = vmatpush.msra.mxu0 %v123
    %229 = vmatpush.msra.mxu0 %v120
    %230 = vmatmul.f32.gmra.mxu0 %v117
    %v231 = vpop.f32.mrf.mxu0
    %v232 = vadd.f32 %v170, %v231
    %233 = vdwg.mxu0
    %234 = vst [vmem:[#allocation10] sm:$0xff] %v192
    %235 = vst [vmem:[#allocation10 + $0x8] sm:$0xff] %v212
    %236 = vst [vmem:[#allocation10 + $0x10] sm:$0xff] %v232
    // Predicated region
    $region38: #{tpu_custom_call.1} parent=1 // pred_check
      _
    $region39: #{tpu_custom_call.1} parent=1 // pred_check_branch
      %238 = sbr.rel (0) target = $region41
    $region40: #{tpu_custom_call.1} parent=1 // pred_region
      %240 = vsyncadd [#allocation4], 0
      %s242 = sshll.u32 [#allocation10], 4
      %s243 = int_to_ptr.vmem [resolvable:$true] %s242
      %s244 = sshll.u32 %s5, 4
      %s245 = int_to_ptr.hbm [resolvable:$true] %s244
      %247 = dma.vmem_to_hbm [thread:$0]  %s243, 384, %s245, [#allocation4]
    $region41: #{tpu_custom_call.1} parent=1 // pred_fallthru
      _
    // Predicated region
    $region42: #{tpu_custom_call.1} parent=1 // pred_check
      _
    $region43: #{tpu_custom_call.1} parent=1 // pred_check_branch
      %249 = sbr.rel (0) target = $region45
    $region44: #{tpu_custom_call.1} parent=1 // pred_region
      %251 = dma.done [#allocation4], 384
    $region45: #{tpu_custom_call.1} parent=1 // pred_fallthru
      _
    %252 = vsyncpa [#allocation3], 1
    %253 = vsyncpa [#allocation6], 1
    %254 = vsyncpa [#allocation9], 1
    %255 = vsyncpa [#allocation4], 1

</llo_original>
